<compile_context>
chip_gen: v7x
topology: tpu7x:2x2x1
jax: 0.10.0
libtpu: 0.0.40
codegen_flags: <defaults>
</compile_context>

<pallas_src>
import jax
import jax.numpy as jnp
from jax.experimental import pallas as pl
from jax.experimental.pallas import tpu as pltpu

_VMEM = pltpu.MemorySpace.VMEM


# ---------------------------------------------------------------------------
# Kernels
# ---------------------------------------------------------------------------

def gcn_kernel(x_ref, adj_ref, w_ref, b_ref, o_ref):
    """Single graph, exact module order: (adj @ (x @ w)) + bias, VMEM resident."""
    h = jnp.dot(x_ref[...], w_ref[...], preferred_element_type=jnp.float32)
    out = jnp.dot(adj_ref[...], h, preferred_element_type=jnp.float32)
    o_ref[...] = (out + b_ref[...]).astype(o_ref.dtype)


def gcn_batched_kernel(x_ref, adj_ref, w_ref, b_ref, o_ref):
    """B graphs in one invocation; output is [B*N, F_out] (sublane-stacked).

    Per graph only the aggregation adj_b @ x_b is computed (contracts the small
    F_in dim); the shared-weight matmul and the bias broadcast/add are done
    once on the stacked [B*N, F_in] slab.
    """
    batch = adj_ref.shape[0]
    # Static unroll; B is small. Each g_b is [N, F_in].
    gs = [
        jnp.dot(adj_ref[b], x_ref[b], preferred_element_type=jnp.float32)
        for b in range(batch)
    ]
    # Sublane stack -> [B*N, F_in]; N is a multiple of 8 so blocks are tile-aligned.
    g = jnp.concatenate(gs, axis=0)
    # One MXU pass against the shared weight: [B*N, F_in] @ [F_in, F_out].
    out = jnp.dot(g, w_ref[...], preferred_element_type=jnp.float32)
    # Single bias broadcast + add (f32 epilogue), then one store.
    o_ref[...] = (out + b_ref[...]).astype(o_ref.dtype)


# ---------------------------------------------------------------------------
# Wrappers
# ---------------------------------------------------------------------------

def graph_conv_layer(node_feature, adj, weight, bias=None):
    """Pallas implementation of GraphConvLayer.forward (single graph)."""
    n, f_in = node_feature.shape
    f_out = weight.shape[1]
    assert adj.shape == (n, n)
    assert weight.shape == (f_in, f_out)
    if bias is None:
        bias = jnp.zeros((1, f_out), dtype=jnp.float32)
    assert bias.shape == (1, f_out)

    itemsize = jnp.dtype(node_feature.dtype).itemsize
    cost = pl.CostEstimate(
        flops=2 * n * f_in * f_out + 2 * n * n * f_out + n * f_out,
        transcendentals=0,
        bytes_accessed=(n * f_in + n * n + f_in * f_out + f_out + n * f_out) * itemsize,
    )

    return pl.pallas_call(
        gcn_kernel,
        out_shape=jax.ShapeDtypeStruct((n, f_out), node_feature.dtype),
        in_specs=[
            pl.BlockSpec(memory_space=_VMEM),  # node_feature
            pl.BlockSpec(memory_space=_VMEM),  # adj
            pl.BlockSpec(memory_space=_VMEM),  # weight
            pl.BlockSpec(memory_space=_VMEM),  # bias
        ],
        out_specs=pl.BlockSpec(memory_space=_VMEM),
        cost_estimate=cost,
    )(node_feature, adj, weight, bias)


def graph_conv_layer_batched(node_features, adjs, weight, bias=None):
    """B graphs (shared weight/bias) in one pallas_call.

    node_features: [B, N, F_in], adjs: [B, N, N] -> output [B, N, F_out].
    The kernel stores a [B*N, F_out] slab; the reshape back to [B, N, F_out]
    outside is a free metadata reshape (no transpose kernel).
    """
    b, n, f_in = node_features.shape
    f_out = weight.shape[1]
    assert adjs.shape == (b, n, n)
    assert weight.shape == (f_in, f_out)
    if bias is None:
        bias = jnp.zeros((1, f_out), dtype=jnp.float32)
    assert bias.shape == (1, f_out)

    itemsize = jnp.dtype(node_features.dtype).itemsize
    cost = pl.CostEstimate(
        flops=b * 2 * n * n * f_in + 2 * (b * n) * f_in * f_out + b * n * f_out,
        transcendentals=0,
        bytes_accessed=(b * n * f_in + b * n * n + f_in * f_out + f_out
                        + b * n * f_out) * itemsize,
    )

    packed = pl.pallas_call(
        gcn_batched_kernel,
        out_shape=jax.ShapeDtypeStruct((b * n, f_out), node_features.dtype),
        in_specs=[
            pl.BlockSpec(memory_space=_VMEM),  # node_features [B, N, F_in]
            pl.BlockSpec(memory_space=_VMEM),  # adjs          [B, N, N]
            pl.BlockSpec(memory_space=_VMEM),  # weight        [F_in, F_out]
            pl.BlockSpec(memory_space=_VMEM),  # bias          [1, F_out]
        ],
        out_specs=pl.BlockSpec(memory_space=_VMEM),
        cost_estimate=cost,
    )(node_features, adjs, weight, bias)

    # Free metadata reshape: [B*N, F_out] -> [B, N, F_out].
    return packed.reshape(b, n, f_out)


def init_params(key, in_features, out_features):
    """Matches the PyTorch module init:
       - weight: xavier_uniform_ with gain = calculate_gain('relu') = sqrt(2)
       - bias:   ones, shape (1, out_features)"""
    gain = jnp.sqrt(2.0)
    bound = gain * jnp.sqrt(6.0 / (in_features + out_features))
    weight = jax.random.uniform(
        key, (in_features, out_features), dtype=jnp.float32,
        minval=-bound, maxval=bound)
    bias = jnp.ones((1, out_features), dtype=jnp.float32)
    return weight, bias


if __name__ == "__main__":
    key = jax.random.PRNGKey(0)
    k_x, k_adj, k_w = jax.random.split(key, 3)

    B, N, F_IN, F_OUT = 4, 16, 8, 32

    node_features = jax.random.normal(k_x, (B, N, F_IN), dtype=jnp.float32)
    adj_raw = jax.random.uniform(k_adj, (B, N, N), dtype=jnp.float32)
    adjs = adj_raw / jnp.sum(adj_raw, axis=-1, keepdims=True)

    weight, bias = init_params(k_w, F_IN, F_OUT)

    # Reference (same semantics as the torch forward), per graph.
    ref_batched = jnp.matmul(adjs, jnp.matmul(node_features, weight)) + bias

    # Batched Pallas path: B graphs in one kernel launch.
    out_batched = jax.block_until_ready(
        graph_conv_layer_batched(node_features, adjs, weight, bias))
    assert out_batched.shape == (B, N, F_OUT)
    assert jnp.allclose(out_batched, ref_batched, atol=1e-5, rtol=1e-5)

    # Batched path with bias=None (module's bias=False branch).
    out_nobias = jax.block_until_ready(
        graph_conv_layer_batched(node_features, adjs, weight, None))
    ref_nobias = jnp.matmul(adjs, jnp.matmul(node_features, weight))
    assert jnp.allclose(out_nobias, ref_nobias, atol=1e-5, rtol=1e-5)

    # Single-graph Pallas path (exact module signature/semantics).
    out_single = jax.block_until_ready(
        graph_conv_layer(node_features[0], adjs[0], weight, bias))
    ref_single = adjs[0] @ (node_features[0] @ weight) + bias
    assert out_single.shape == (N, F_OUT)
    assert jnp.allclose(out_single, ref_single, atol=1e-5, rtol=1e-5)

    print("KERNEL_OK")
</pallas_src>

<mosaic_0001>
module attributes {stable_mosaic.version = 11 : i64} {
  func.func @gcn_batched_kernel(%arg0: memref<4x16x8xf32, #tpu.memory_space<vmem>>, %arg1: memref<4x16x16xf32, #tpu.memory_space<vmem>>, %arg2: memref<8x32xf32, #tpu.memory_space<vmem>>, %arg3: memref<1x32xf32, #tpu.memory_space<vmem>>, %arg4: memref<64x32xf32, #tpu.memory_space<vmem>>) attributes {dimension_semantics = [], scalar_prefetch = 0 : i64, scratch_operands = 0 : i64, tpu.core_type = #tpu.core_type<tc>} {
    %c0 = arith.constant 0 : index
    %c0_0 = arith.constant 0 : index
    %c0_1 = arith.constant 0 : index
    %0 = vector.load %arg1[%c0, %c0_0, %c0_1] : memref<4x16x16xf32, #tpu.memory_space<vmem>>, vector<1x16x16xf32>
    %1 = vector.shape_cast %0 : vector<1x16x16xf32> to vector<16x16xf32>
    %c0_2 = arith.constant 0 : index
    %c0_3 = arith.constant 0 : index
    %c0_4 = arith.constant 0 : index
    %2 = vector.load %arg0[%c0_2, %c0_3, %c0_4] : memref<4x16x8xf32, #tpu.memory_space<vmem>>, vector<1x16x8xf32>
    %3 = vector.shape_cast %2 : vector<1x16x8xf32> to vector<16x8xf32>
    %cst = arith.constant dense<0.000000e+00> : vector<16x8xf32>
    %4 = tpu.matmul %1, %3, %cst {dimension_numbers = #tpu.dot_dimension_numbers<[1], [0], [0], [1], [0, 0, 1, 1], [], []>} : vector<16x16xf32>, vector<16x8xf32>, vector<16x8xf32> -> vector<16x8xf32>
    %c1 = arith.constant 1 : index
    %c0_5 = arith.constant 0 : index
    %c0_6 = arith.constant 0 : index
    %5 = vector.load %arg1[%c1, %c0_5, %c0_6] : memref<4x16x16xf32, #tpu.memory_space<vmem>>, vector<1x16x16xf32>
    %6 = vector.shape_cast %5 : vector<1x16x16xf32> to vector<16x16xf32>
    %c1_7 = arith.constant 1 : index
    %c0_8 = arith.constant 0 : index
    %c0_9 = arith.constant 0 : index
    %7 = vector.load %arg0[%c1_7, %c0_8, %c0_9] : memref<4x16x8xf32, #tpu.memory_space<vmem>>, vector<1x16x8xf32>
    %8 = vector.shape_cast %7 : vector<1x16x8xf32> to vector<16x8xf32>
    %cst_10 = arith.constant dense<0.000000e+00> : vector<16x8xf32>
    %9 = tpu.matmul %6, %8, %cst_10 {dimension_numbers = #tpu.dot_dimension_numbers<[1], [0], [0], [1], [0, 0, 1, 1], [], []>} : vector<16x16xf32>, vector<16x8xf32>, vector<16x8xf32> -> vector<16x8xf32>
    %c2 = arith.constant 2 : index
    %c0_11 = arith.constant 0 : index
    %c0_12 = arith.constant 0 : index
    %10 = vector.load %arg1[%c2, %c0_11, %c0_12] : memref<4x16x16xf32, #tpu.memory_space<vmem>>, vector<1x16x16xf32>
    %11 = vector.shape_cast %10 : vector<1x16x16xf32> to vector<16x16xf32>
    %c2_13 = arith.constant 2 : index
    %c0_14 = arith.constant 0 : index
    %c0_15 = arith.constant 0 : index
    %12 = vector.load %arg0[%c2_13, %c0_14, %c0_15] : memref<4x16x8xf32, #tpu.memory_space<vmem>>, vector<1x16x8xf32>
    %13 = vector.shape_cast %12 : vector<1x16x8xf32> to vector<16x8xf32>
    %cst_16 = arith.constant dense<0.000000e+00> : vector<16x8xf32>
    %14 = tpu.matmul %11, %13, %cst_16 {dimension_numbers = #tpu.dot_dimension_numbers<[1], [0], [0], [1], [0, 0, 1, 1], [], []>} : vector<16x16xf32>, vector<16x8xf32>, vector<16x8xf32> -> vector<16x8xf32>
    %c3 = arith.constant 3 : index
    %c0_17 = arith.constant 0 : index
    %c0_18 = arith.constant 0 : index
    %15 = vector.load %arg1[%c3, %c0_17, %c0_18] : memref<4x16x16xf32, #tpu.memory_space<vmem>>, vector<1x16x16xf32>
    %16 = vector.shape_cast %15 : vector<1x16x16xf32> to vector<16x16xf32>
    %c3_19 = arith.constant 3 : index
    %c0_20 = arith.constant 0 : index
    %c0_21 = arith.constant 0 : index
    %17 = vector.load %arg0[%c3_19, %c0_20, %c0_21] : memref<4x16x8xf32, #tpu.memory_space<vmem>>, vector<1x16x8xf32>
    %18 = vector.shape_cast %17 : vector<1x16x8xf32> to vector<16x8xf32>
    %cst_22 = arith.constant dense<0.000000e+00> : vector<16x8xf32>
    %19 = tpu.matmul %16, %18, %cst_22 {dimension_numbers = #tpu.dot_dimension_numbers<[1], [0], [0], [1], [0, 0, 1, 1], [], []>} : vector<16x16xf32>, vector<16x8xf32>, vector<16x8xf32> -> vector<16x8xf32>
    %20 = tpu.concatenate %4, %9, %14, %19 in 0 : vector<16x8xf32>, vector<16x8xf32>, vector<16x8xf32>, vector<16x8xf32> -> vector<64x8xf32>
    %c0_23 = arith.constant 0 : index
    %c0_24 = arith.constant 0 : index
    %21 = vector.load %arg2[%c0_23, %c0_24] : memref<8x32xf32, #tpu.memory_space<vmem>>, vector<8x32xf32>
    %cst_25 = arith.constant dense<0.000000e+00> : vector<64x32xf32>
    %22 = tpu.matmul %20, %21, %cst_25 {dimension_numbers = #tpu.dot_dimension_numbers<[1], [0], [0], [1], [0, 0, 1, 1], [], []>} : vector<64x8xf32>, vector<8x32xf32>, vector<64x32xf32> -> vector<64x32xf32>
    %c0_26 = arith.constant 0 : index
    %c0_27 = arith.constant 0 : index
    %23 = vector.load %arg3[%c0_26, %c0_27] : memref<1x32xf32, #tpu.memory_space<vmem>>, vector<1x32xf32>
    %24 = vector.broadcast %23 : vector<1x32xf32> to vector<64x32xf32>
    %25 = arith.addf %22, %24 : vector<64x32xf32>
    %c0_28 = arith.constant 0 : index
    %c0_29 = arith.constant 0 : index
    %26 = vector.load %arg4[%c0_28, %c0_29] : memref<64x32xf32, #tpu.memory_space<vmem>>, vector<64x32xf32>
    tpu.vector_store %arg4[%c0_28, %c0_29], %25 {strides = array<i32>} : memref<64x32xf32, #tpu.memory_space<vmem>>, vector<64x32xf32>,
    return
  }
}

</mosaic_0001>

<llo_original>
// kernel: tpu_custom_call.1
$region0: #{tpu_custom_call.1}
  #allocation0 [shape = 'u32[]', space=smem, size = 0x4, offset = 0x4, fixed_abs, tag = 'smem constant byte address 0x4 - core index']
  #allocation1 [shape = 'u32[144,128]{1,0:T(1,128)}', space=vmem, size = 0x12000, scoped, tag = 'internal scratch']
  %s0 = inlined_call_operand.vmem [shape: f32[4,16,8], index: 0, kind: input, shape index: {}]
  %s1 = inlined_call_operand.vmem [shape: f32[4,16,16], index: 1, kind: input, shape index: {}]
  %s2 = inlined_call_operand.vmem [shape: f32[8,32], index: 2, kind: input, shape index: {}]
  %s3 = inlined_call_operand.vmem [shape: f32[1,32], index: 3, kind: input, shape index: {}]
  %s4 = inlined_call_operand.vmem [shape: f32[64,32], index: 4, kind: output, shape index: {}]
  %s5 = sld [smem:[#allocation0]]
  $region26: #{tpu_custom_call.1} parent=0
    _
  %s7 = ssub.s32 1, %s5
  %s8 = scalar_select 0, %s7, %s5
  // Predicated region
  $region2: #{tpu_custom_call.1} parent=0 // pred_check
    _
  $region3: #{tpu_custom_call.1} parent=0 // pred_check_branch
    %10 = sbr.rel (0) target = $region5
  $region4: #{tpu_custom_call.1} parent=0 // pred_region
    _
  $region5: #{tpu_custom_call.1} parent=0 // pred_fallthru
    _
  // Predicated region
  $region6: #{tpu_custom_call.1} parent=0 // pred_check
    _
  $region7: #{tpu_custom_call.1} parent=0 // pred_check_branch
    %12 = sbr.rel (0) target = $region9
  $region8: #{tpu_custom_call.1} parent=0 // pred_region
    _
  $region9: #{tpu_custom_call.1} parent=0 // pred_fallthru
    _
  // Predicated region
  $region10: #{tpu_custom_call.1} parent=0 // pred_check
    _
  $region11: #{tpu_custom_call.1} parent=0 // pred_check_branch
    %14 = sbr.rel (0) target = $region13
  $region12: #{tpu_custom_call.1} parent=0 // pred_region
    _
  $region13: #{tpu_custom_call.1} parent=0 // pred_fallthru
    _
  // Predicated region
  $region14: #{tpu_custom_call.1} parent=0 // pred_check
    _
  $region15: #{tpu_custom_call.1} parent=0 // pred_check_branch
    %16 = sbr.rel (0) target = $region17
  $region16: #{tpu_custom_call.1} parent=0 // pred_region
    _
  $region17: #{tpu_custom_call.1} parent=0 // pred_fallthru
    _
  %v17 = vld [vmem:[%s1] sm:$0xff]
  %v18 = vld [vmem:[%s1 + $0x8] sm:$0xff]
  %v19 = vld [vmem:[%s0] sm:$0xff]
  %v20 = vld [vmem:[%s0 + $0x8] sm:$0xff]
  %vm21 = vcmask 130048
  %v23 = vsel %vm21, %v17, 0
  %v26 = vsel %vm21, %v18, 0
  %28 = vmatprep.subr.mxu0 0.0
  %29 = vmatpush1.msra.mxu0 %v19
  %30 = vmatprep.subr.mxu0 0.0
  %31 = vmatpush1.msra.mxu0 %v20
  %32 = vmatprep.subr.mxu0 0.0
  %33 = vmatpush1.msra.mxu0 0.0
  %34 = vmatprep.subr.mxu0 0.0
  %35 = vmatpush1.msra.mxu0 0.0
  %36 = vmatprep.subr.mxu0 0.0
  %37 = vmatpush1.msra.mxu0 0.0
  %38 = vmatprep.subr.mxu0 0.0
  %39 = vmatpush1.msra.mxu0 0.0
  %40 = vmatprep.subr.mxu0 0.0
  %41 = vmatpush1.msra.mxu0 0.0
  %42 = vmatprep.subr.mxu0 0.0
  %43 = vmatpush1.msra.mxu0 0.0
  %44 = vmatprep.subr.mxu0 0.0
  %45 = vmatpush1.msra.mxu0 0.0
  %46 = vmatprep.subr.mxu0 0.0
  %47 = vmatpush1.msra.mxu0 0.0
  %48 = vmatprep.subr.mxu0 0.0
  %49 = vmatpush1.msra.mxu0 0.0
  %50 = vmatprep.subr.mxu0 0.0
  %51 = vmatpush1.msra.mxu0 0.0
  %52 = vmatprep.subr.mxu0 0.0
  %53 = vmatpush1.msra.mxu0 0.0
  %54 = vmatprep.subr.mxu0 0.0
  %55 = vmatpush1.msra.mxu0 0.0
  %56 = vmatprep.subr.mxu0 0.0
  %57 = vmatpush1.msra.mxu0 0.0
  %58 = vmatprep.subr.mxu0 0.0
  %59 = vmatpush1.msra.mxu0 0.0
  %60 = vmatprep.subr.mxu0 0.0
  %61 = vmatpush1.msra.mxu0 0.0
  %62 = vmatprep.subr.mxu0 0.0
  %63 = vmatpush1.msra.mxu0 0.0
  %64 = vmatprep.subr.mxu0 0.0
  %65 = vmatpush1.msra.mxu0 0.0
  %66 = vmatprep.subr.mxu0 0.0
  %67 = vmatpush1.msra.mxu0 0.0
  %68 = vmatprep.subr.mxu0 0.0
  %69 = vmatpush1.msra.mxu0 0.0
  %70 = vmatprep.subr.mxu0 0.0
  %71 = vmatpush1.msra.mxu0 0.0
  %72 = vmatprep.subr.mxu0 0.0
  %73 = vmatpush1.msra.mxu0 0.0
  %74 = vmatprep.subr.mxu0 0.0
  %75 = vmatpush1.msra.mxu0 0.0
  %76 = vmatprep.subr.mxu0 0.0
  %77 = vmatpush1.msra.mxu0 0.0
  %78 = vmatprep.subr.mxu0 0.0
  %79 = vmatpush1.msra.mxu0 0.0
  %80 = vmatprep.subr.mxu0 0.0
  %81 = vmatpush1.msra.mxu0 0.0
  %82 = vmatprep.subr.mxu0 0.0
  %83 = vmatpush1.msra.mxu0 0.0
  %84 = vmatprep.subr.mxu0 0.0
  %85 = vmatpush1.msra.mxu0 0.0
  %86 = vmatprep.subr.mxu0 0.0
  %87 = vmatpush1.msra.mxu0 0.0
  %88 = vmatprep.subr.mxu0 0.0
  %89 = vmatpush1.msra.mxu0 0.0
  %90 = vmatprep.subr.mxu0 0.0
  %91 = vmatpush1.msra.mxu0 0.0
  %92 = vmatprep.mubr.f32.mxu0 0.0
  %93 = vmatmul.mubr.f32.gmra.mrb[0].mxu0 %v23
  %v94 = vpop.f32.mrb[0].mxu0
  %v95 = vadd.f32 0.0, %v94
  %v96 = vpop.f32.mrb[0].mxu0
  %97 = vmatprep.mubr.f32.mxu0 0.0
  %98 = vmatmul.mubr.f32.gmra.mrb[0].mxu0 %v26
  %v99 = vpop.f32.mrb[0].mxu0
  %v100 = vadd.f32 0.0, %v99
  %v101 = vpop.f32.mrb[0].mxu0
  %102 = vdwg.mxu0
  %s103 = scalar_lea.vmem %s1, 16
  %v104 = vld [vmem:[%s103] sm:$0xff]
  %v105 = vld [vmem:[%s103 + $0x8] sm:$0xff]
  %s106 = scalar_lea.vmem %s0, 16
  %v107 = vld [vmem:[%s106] sm:$0xff]
  %v108 = vld [vmem:[%s106 + $0x8] sm:$0xff]
  %v110 = vsel %vm21, %v104, 0
  %v113 = vsel %vm21, %v105, 0
  %115 = vmatprep.subr.mxu0 0.0
  %116 = vmatpush1.msra.mxu0 %v107
  %117 = vmatprep.subr.mxu0 0.0
  %118 = vmatpush1.msra.mxu0 %v108
  %119 = vmatprep.subr.mxu0 0.0
  %120 = vmatpush1.msra.mxu0 0.0
  %121 = vmatprep.subr.mxu0 0.0
  %122 = vmatpush1.msra.mxu0 0.0
  %123 = vmatprep.subr.mxu0 0.0
  %124 = vmatpush1.msra.mxu0 0.0
  %125 = vmatprep.subr.mxu0 0.0
  %126 = vmatpush1.msra.mxu0 0.0
  %127 = vmatprep.subr.mxu0 0.0
  %128 = vmatpush1.msra.mxu0 0.0
  %129 = vmatprep.subr.mxu0 0.0
  %130 = vmatpush1.msra.mxu0 0.0
  %131 = vmatprep.subr.mxu0 0.0
  %132 = vmatpush1.msra.mxu0 0.0
  %133 = vmatprep.subr.mxu0 0.0
  %134 = vmatpush1.msra.mxu0 0.0
  %135 = vmatprep.subr.mxu0 0.0
  %136 = vmatpush1.msra.mxu0 0.0
  %137 = vmatprep.subr.mxu0 0.0
  %138 = vmatpush1.msra.mxu0 0.0
  %139 = vmatprep.subr.mxu0 0.0
  %140 = vmatpush1.msra.mxu0 0.0
  %141 = vmatprep.subr.mxu0 0.0
  %142 = vmatpush1.msra.mxu0 0.0
  %143 = vmatprep.subr.mxu0 0.0
  %144 = vmatpush1.msra.mxu0 0.0
  %145 = vmatprep.subr.mxu0 0.0
  %146 = vmatpush1.msra.mxu0 0.0
  %147 = vmatprep.subr.mxu0 0.0
  %148 = vmatpush1.msra.mxu0 0.0
  %149 = vmatprep.subr.mxu0 0.0
  %150 = vmatpush1.msra.mxu0 0.0
  %151 = vmatprep.subr.mxu0 0.0
  %152 = vmatpush1.msra.mxu0 0.0
  %153 = vmatprep.subr.mxu0 0.0
  %154 = vmatpush1.msra.mxu0 0.0
  %155 = vmatprep.subr.mxu0 0.0
  %156 = vmatpush1.msra.mxu0 0.0
  %157 = vmatprep.subr.mxu0 0.0
  %158 = vmatpush1.msra.mxu0 0.0
  %159 = vmatprep.subr.mxu0 0.0
  %160 = vmatpush1.msra.mxu0 0.0
  %161 = vmatprep.subr.mxu0 0.0
  %162 = vmatpush1.msra.mxu0 0.0
  %163 = vmatprep.subr.mxu0 0.0
  %164 = vmatpush1.msra.mxu0 0.0
  %165 = vmatprep.subr.mxu0 0.0
  %166 = vmatpush1.msra.mxu0 0.0
  %167 = vmatprep.subr.mxu0 0.0
  %168 = vmatpush1.msra.mxu0 0.0
  %169 = vmatprep.subr.mxu0 0.0
  %170 = vmatpush1.msra.mxu0 0.0
  %171 = vmatprep.subr.mxu0 0.0
  %172 = vmatpush1.msra.mxu0 0.0
  %173 = vmatprep.subr.mxu0 0.0
  %174 = vmatpush1.msra.mxu0 0.0
  %175 = vmatprep.subr.mxu0 0.0
  %176 = vmatpush1.msra.mxu0 0.0
  %177 = vmatprep.subr.mxu0 0.0
  %178 = vmatpush1.msra.mxu0 0.0
  %179 = vmatprep.mubr.f32.mxu0 0.0
  %180 = vmatmul.mubr.f32.gmra.mrb[0].mxu0 %v110
  %v181 = vpop.f32.mrb[0].mxu0
  %v182 = vadd.f32 0.0, %v181
  %v183 = vpop.f32.mrb[0].mxu0
  %184 = vmatprep.mubr.f32.mxu0 0.0
  %185 = vmatmul.mubr.f32.gmra.mrb[0].mxu0 %v113
  %v186 = vpop.f32.mrb[0].mxu0
  %v187 = vadd.f32 0.0, %v186
  %v188 = vpop.f32.mrb[0].mxu0
  %189 = vdwg.mxu0
  %s190 = scalar_lea.vmem %s1, 32
  %v191 = vld [vmem:[%s190] sm:$0xff]
  %v192 = vld [vmem:[%s190 + $0x8] sm:$0xff]
  %s193 = scalar_lea.vmem %s0, 32
  %v194 = vld [vmem:[%s193] sm:$0xff]
  %v195 = vld [vmem:[%s193 + $0x8] sm:$0xff]
  %v197 = vsel %vm21, %v191, 0
  %v200 = vsel %vm21, %v192, 0
  %202 = vmatprep.subr.mxu0 0.0
  %203 = vmatpush1.msra.mxu0 %v194
  %204 = vmatprep.subr.mxu0 0.0
  %205 = vmatpush1.msra.mxu0 %v195
  %206 = vmatprep.subr.mxu0 0.0
  %207 = vmatpush1.msra.mxu0 0.0
  %208 = vmatprep.subr.mxu0 0.0
  %209 = vmatpush1.msra.mxu0 0.0
  %210 = vmatprep.subr.mxu0 0.0
  %211 = vmatpush1.msra.mxu0 0.0
  %212 = vmatprep.subr.mxu0 0.0
  %213 = vmatpush1.msra.mxu0 0.0
  %214 = vmatprep.subr.mxu0 0.0
  %215 = vmatpush1.msra.mxu0 0.0
  %216 = vmatprep.subr.mxu0 0.0
  %217 = vmatpush1.msra.mxu0 0.0
  %218 = vmatprep.subr.mxu0 0.0
  %219 = vmatpush1.msra.mxu0 0.0
  %220 = vmatprep.subr.mxu0 0.0
  %221 = vmatpush1.msra.mxu0 0.0
  %222 = vmatprep.subr.mxu0 0.0
  %223 = vmatpush1.msra.mxu0 0.0
  %224 = vmatprep.subr.mxu0 0.0
  %225 = vmatpush1.msra.mxu0 0.0
  %226 = vmatprep.subr.mxu0 0.0
  %227 = vmatpush1.msra.mxu0 0.0
  %228 = vmatprep.subr.mxu0 0.0
  %229 = vmatpush1.msra.mxu0 0.0
  %230 = vmatprep.subr.mxu0 0.0
  %231 = vmatpush1.msra.mxu0 0.0
  %232 = vmatprep.subr.mxu0 0.0
  %233 = vmatpush1.msra.mxu0 0.0
  %234 = vmatprep.subr.mxu0 0.0
  %235 = vmatpush1.msra.mxu0 0.0
  %236 = vmatprep.subr.mxu0 0.0
  %237 = vmatpush1.msra.mxu0 0.0
  %238 = vmatprep.subr.mxu0 0.0
  %239 = vmatpush1.msra.mxu0 0.0
  %240 = vmatprep.subr.mxu0 0.0
  %241 = vmatpush1.msra.mxu0 0.0
  %242 = vmatprep.subr.mxu0 0.0
  %243 = vmatpush1.msra.mxu0 0.0
  %244 = vmatprep.subr.mxu0 0.0
  %245 = vmatpush1.msra.mxu0 0.0
  %246 = vmatprep.subr.mxu0 0.0
  %247 = vmatpush1.msra.mxu0 0.0
  %248 = vmatprep.subr.mxu0 0.0
  %249 = vmatpush1.msra.mxu0 0.0
  %250 = vmatprep.subr.mxu0 0.0
  %251 = vmatpush1.msra.mxu0 0.0
  %252 = vmatprep.subr.mxu0 0.0
  %253 = vmatpush1.msra.mxu0 0.0
  %254 = vmatprep.subr.mxu0 0.0
  %255 = vmatpush1.msra.mxu0 0.0
  %256 = vmatprep.subr.mxu0 0.0
  %257 = vmatpush1.msra.mxu0 0.0
  %258 = vmatprep.subr.mxu0 0.0
  %259 = vmatpush1.msra.mxu0 0.0
  %260 = vmatprep.subr.mxu0 0.0
  %261 = vmatpush1.msra.mxu0 0.0
  %262 = vmatprep.subr.mxu0 0.0
  %263 = vmatpush1.msra.mxu0 0.0
  %264 = vmatprep.subr.mxu0 0.0
  %265 = vmatpush1.msra.mxu0 0.0
  %266 = vmatprep.mubr.f32.mxu0 0.0
  %267 = vmatmul.mubr.f32.gmra.mrb[0].mxu0 %v197
  %v268 = vpop.f32.mrb[0].mxu0
  %v269 = vadd.f32 0.0, %v268
  %v270 = vpop.f32.mrb[0].mxu0
  %271 = vmatprep.mubr.f32.mxu0 0.0
  %272 = vmatmul.mubr.f32.gmra.mrb[0].mxu0 %v200
  %v273 = vpop.f32.mrb[0].mxu0
  %v274 = vadd.f32 0.0, %v273
  %v275 = vpop.f32.mrb[0].mxu0
  %276 = vdwg.mxu0
  %s277 = scalar_lea.vmem %s1, 48
  %v278 = vld [vmem:[%s277] sm:$0xff]
  %v279 = vld [vmem:[%s277 + $0x8] sm:$0xff]
  %s280 = scalar_lea.vmem %s0, 48
  %v281 = vld [vmem:[%s280] sm:$0xff]
  %v282 = vld [vmem:[%s280 + $0x8] sm:$0xff]
  %v284 = vsel %vm21, %v278, 0
  %v287 = vsel %vm21, %v279, 0
  %289 = vmatprep.subr.mxu0 0.0
  %290 = vmatpush1.msra.mxu0 %v281
  %291 = vmatprep.subr.mxu0 0.0
  %292 = vmatpush1.msra.mxu0 %v282
  %293 = vmatprep.subr.mxu0 0.0
  %294 = vmatpush1.msra.mxu0 0.0
  %295 = vmatprep.subr.mxu0 0.0
  %296 = vmatpush1.msra.mxu0 0.0
  %297 = vmatprep.subr.mxu0 0.0
  %298 = vmatpush1.msra.mxu0 0.0
  %299 = vmatprep.subr.mxu0 0.0
  %300 = vmatpush1.msra.mxu0 0.0
  %301 = vmatprep.subr.mxu0 0.0
  %302 = vmatpush1.msra.mxu0 0.0
  %303 = vmatprep.subr.mxu0 0.0
  %304 = vmatpush1.msra.mxu0 0.0
  %305 = vmatprep.subr.mxu0 0.0
  %306 = vmatpush1.msra.mxu0 0.0
  %307 = vmatprep.subr.mxu0 0.0
  %308 = vmatpush1.msra.mxu0 0.0
  %309 = vmatprep.subr.mxu0 0.0
  %310 = vmatpush1.msra.mxu0 0.0
  %311 = vmatprep.subr.mxu0 0.0
  %312 = vmatpush1.msra.mxu0 0.0
  %313 = vmatprep.subr.mxu0 0.0
  %314 = vmatpush1.msra.mxu0 0.0
  %315 = vmatprep.subr.mxu0 0.0
  %316 = vmatpush1.msra.mxu0 0.0
  %317 = vmatprep.subr.mxu0 0.0
  %318 = vmatpush1.msra.mxu0 0.0
  %319 = vmatprep.subr.mxu0 0.0
  %320 = vmatpush1.msra.mxu0 0.0
  %321 = vmatprep.subr.mxu0 0.0
  %322 = vmatpush1.msra.mxu0 0.0
  %323 = vmatprep.subr.mxu0 0.0
  %324 = vmatpush1.msra.mxu0 0.0
  %325 = vmatprep.subr.mxu0 0.0
  %326 = vmatpush1.msra.mxu0 0.0
  %327 = vmatprep.subr.mxu0 0.0
  %328 = vmatpush1.msra.mxu0 0.0
  %329 = vmatprep.subr.mxu0 0.0
  %330 = vmatpush1.msra.mxu0 0.0
  %331 = vmatprep.subr.mxu0 0.0
  %332 = vmatpush1.msra.mxu0 0.0
  %333 = vmatprep.subr.mxu0 0.0
  %334 = vmatpush1.msra.mxu0 0.0
  %335 = vmatprep.subr.mxu0 0.0
  %336 = vmatpush1.msra.mxu0 0.0
  %337 = vmatprep.subr.mxu0 0.0
  %338 = vmatpush1.msra.mxu0 0.0
  %339 = vmatprep.subr.mxu0 0.0
  %340 = vmatpush1.msra.mxu0 0.0
  %341 = vmatprep.subr.mxu0 0.0
  %342 = vmatpush1.msra.mxu0 0.0
  %343 = vmatprep.subr.mxu0 0.0
  %344 = vmatpush1.msra.mxu0 0.0
  %345 = vmatprep.subr.mxu0 0.0
  %346 = vmatpush1.msra.mxu0 0.0
  %347 = vmatprep.subr.mxu0 0.0
  %348 = vmatpush1.msra.mxu0 0.0
  %349 = vmatprep.subr.mxu0 0.0
  %350 = vmatpush1.msra.mxu0 0.0
  %351 = vmatprep.subr.mxu0 0.0
  %352 = vmatpush1.msra.mxu0 0.0
  %353 = vmatprep.mubr.f32.mxu0 0.0
  %354 = vmatmul.mubr.f32.gmra.mrb[0].mxu0 %v284
  %v355 = vpop.f32.mrb[0].mxu0
  %v356 = vadd.f32 0.0, %v355
  %v357 = vpop.f32.mrb[0].mxu0
  %358 = vmatprep.mubr.f32.mxu0 0.0
  %359 = vmatmul.mubr.f32.gmra.mrb[0].mxu0 %v287
  %v360 = vpop.f32.mrb[0].mxu0
  %v361 = vadd.f32 0.0, %v360
  %v362 = vpop.f32.mrb[0].mxu0
  %363 = vdwg.mxu0
  %v364 = vld [vmem:[%s2] sm:$0xff]
  %v365 = vld [vmem:[%s3] sm:$0x1]
  %v367 = vlaneseq
  %v368 = vshrl.u32 %v367, 7
  %v369 = vsub.s32 0, %v368
  %v370 = vrot.slane %v365, %v369
  %vm372 = vcmask 64512
  %v374 = vsel %vm372, %v95, 0
  %v377 = vsel %vm372, %v100, 0
  %v380 = vsel %vm372, %v182, 0
  %v383 = vsel %vm372, %v187, 0
  %v386 = vsel %vm372, %v269, 0
  %v389 = vsel %vm372, %v274, 0
  %v392 = vsel %vm372, %v356, 0
  %v395 = vsel %vm372, %v361, 0
  %397 = vmatprep.subr.mxu0 0.0
  %398 = vmatpush1.msra.mxu0 %v364
  %399 = vmatprep.subr.mxu0 0.0
  %400 = vmatpush1.msra.mxu0 0.0
  %401 = vmatprep.subr.mxu0 0.0
  %402 = vmatpush1.msra.mxu0 0.0
  %403 = vmatprep.subr.mxu0 0.0
  %404 = vmatpush1.msra.mxu0 0.0
  %405 = vmatprep.subr.mxu0 0.0
  %406 = vmatpush1.msra.mxu0 0.0
  %407 = vmatprep.subr.mxu0 0.0
  %408 = vmatpush1.msra.mxu0 0.0
  %409 = vmatprep.subr.mxu0 0.0
  %410 = vmatpush1.msra.mxu0 0.0
  %411 = vmatprep.subr.mxu0 0.0
  %412 = vmatpush1.msra.mxu0 0.0
  %413 = vmatprep.subr.mxu0 0.0
  %414 = vmatpush1.msra.mxu0 0.0
  %415 = vmatprep.subr.mxu0 0.0
  %416 = vmatpush1.msra.mxu0 0.0
  %417 = vmatprep.subr.mxu0 0.0
  %418 = vmatpush1.msra.mxu0 0.0
  %419 = vmatprep.subr.mxu0 0.0
  %420 = vmatpush1.msra.mxu0 0.0
  %421 = vmatprep.subr.mxu0 0.0
  %422 = vmatpush1.msra.mxu0 0.0
  %423 = vmatprep.subr.mxu0 0.0
  %424 = vmatpush1.msra.mxu0 0.0
  %425 = vmatprep.subr.mxu0 0.0
  %426 = vmatpush1.msra.mxu0 0.0
  %427 = vmatprep.subr.mxu0 0.0
  %428 = vmatpush1.msra.mxu0 0.0
  %429 = vmatprep.subr.mxu0 0.0
  %430 = vmatpush1.msra.mxu0 0.0
  %431 = vmatprep.subr.mxu0 0.0
  %432 = vmatpush1.msra.mxu0 0.0
  %433 = vmatprep.subr.mxu0 0.0
  %434 = vmatpush1.msra.mxu0 0.0
  %435 = vmatprep.subr.mxu0 0.0
  %436 = vmatpush1.msra.mxu0 0.0
  %437 = vmatprep.subr.mxu0 0.0
  %438 = vmatpush1.msra.mxu0 0.0
  %439 = vmatprep.subr.mxu0 0.0
  %440 = vmatpush1.msra.mxu0 0.0
  %441 = vmatprep.subr.mxu0 0.0
  %442 = vmatpush1.msra.mxu0 0.0
  %443 = vmatprep.subr.mxu0 0.0
  %444 = vmatpush1.msra.mxu0 0.0
  %445 = vmatprep.subr.mxu0 0.0
  %446 = vmatpush1.msra.mxu0 0.0
  %447 = vmatprep.subr.mxu0 0.0
  %448 = vmatpush1.msra.mxu0 0.0
  %449 = vmatprep.subr.mxu0 0.0
  %450 = vmatpush1.msra.mxu0 0.0
  %451 = vmatprep.subr.mxu0 0.0
  %452 = vmatpush1.msra.mxu0 0.0
  %453 = vmatprep.subr.mxu0 0.0
  %454 = vmatpush1.msra.mxu0 0.0
  %455 = vmatprep.subr.mxu0 0.0
  %456 = vmatpush1.msra.mxu0 0.0
  %457 = vmatprep.subr.mxu0 0.0
  %458 = vmatpush1.msra.mxu0 0.0
  %459 = vmatprep.subr.mxu0 0.0
  %460 = vmatpush1.msra.mxu0 0.0
  %461 = vmatprep.mubr.f32.mxu0 0.0
  %462 = vmatmul.mubr.f32.gmra.mrb[0].mxu0 %v374
  %v463 = vpop.f32.mrb[0].mxu0
  %v464 = vadd.f32 %v370, %v463
  %v465 = vpop.f32.mrb[0].mxu0
  %466 = vmatprep.mubr.f32.mxu0 0.0
  %467 = vmatmul.mubr.f32.gmra.mrb[0].mxu0 %v377
  %v468 = vpop.f32.mrb[0].mxu0
  %v469 = vadd.f32 %v370, %v468
  %v470 = vpop.f32.mrb[0].mxu0
  %471 = vmatprep.mubr.f32.mxu0 0.0
  %472 = vmatmul.mubr.f32.gmra.mrb[0].mxu0 %v380
  %v473 = vpop.f32.mrb[0].mxu0
  %v474 = vadd.f32 %v370, %v473
  %v475 = vpop.f32.mrb[0].mxu0
  %476 = vmatprep.mubr.f32.mxu0 0.0
  %477 = vmatmul.mubr.f32.gmra.mrb[0].mxu0 %v383
  %v478 = vpop.f32.mrb[0].mxu0
  %v479 = vadd.f32 %v370, %v478
  %v480 = vpop.f32.mrb[0].mxu0
  %481 = vmatprep.mubr.f32.mxu0 0.0
  %482 = vmatmul.mubr.f32.gmra.mrb[0].mxu0 %v386
  %v483 = vpop.f32.mrb[0].mxu0
  %v484 = vadd.f32 %v370, %v483
  %v485 = vpop.f32.mrb[0].mxu0
  %486 = vmatprep.mubr.f32.mxu0 0.0
  %487 = vmatmul.mubr.f32.gmra.mrb[0].mxu0 %v389
  %v488 = vpop.f32.mrb[0].mxu0
  %v489 = vadd.f32 %v370, %v488
  %v490 = vpop.f32.mrb[0].mxu0
  %491 = vmatprep.mubr.f32.mxu0 0.0
  %492 = vmatmul.mubr.f32.gmra.mrb[0].mxu0 %v392
  %v493 = vpop.f32.mrb[0].mxu0
  %v494 = vadd.f32 %v370, %v493
  %v495 = vpop.f32.mrb[0].mxu0
  %496 = vmatprep.mubr.f32.mxu0 0.0
  %497 = vmatmul.mubr.f32.gmra.mrb[0].mxu0 %v395
  %v498 = vpop.f32.mrb[0].mxu0
  %v499 = vadd.f32 %v370, %v498
  %v500 = vpop.f32.mrb[0].mxu0
  %501 = vdwg.mxu0
  %vm502 = vcmask 261120
  %503 = vst.msk [vmem:[%s4] sm:$0xff] %vm502, %v464
  %504 = vst.msk [vmem:[%s4 + $0x8] sm:$0xff] %vm502, %v469
  %505 = vst.msk [vmem:[%s4 + $0x10] sm:$0xff] %vm502, %v474
  %506 = vst.msk [vmem:[%s4 + $0x18] sm:$0xff] %vm502, %v479
  %507 = vst.msk [vmem:[%s4 + $0x20] sm:$0xff] %vm502, %v484
  %508 = vst.msk [vmem:[%s4 + $0x28] sm:$0xff] %vm502, %v489
  %509 = vst.msk [vmem:[%s4 + $0x30] sm:$0xff] %vm502, %v494
  %510 = vst.msk [vmem:[%s4 + $0x38] sm:$0xff] %vm502, %v499
  // Predicated region
  $region18: #{tpu_custom_call.1} parent=0 // pred_check
    _
  $region19: #{tpu_custom_call.1} parent=0 // pred_check_branch
    %512 = sbr.rel (0) target = $region21
  $region20: #{tpu_custom_call.1} parent=0 // pred_region
    _
  $region21: #{tpu_custom_call.1} parent=0 // pred_fallthru
    _
  // Predicated region
  $region22: #{tpu_custom_call.1} parent=0 // pred_check
    _
  $region23: #{tpu_custom_call.1} parent=0 // pred_check_branch
    %514 = sbr.rel (0) target = $region25
  $region24: #{tpu_custom_call.1} parent=0 // pred_region
    _
  $region25: #{tpu_custom_call.1} parent=0 // pred_fallthru
    _

</llo_original>
